<compile_context>
chip_gen: v7x
topology: tpu7x:2x2x1
jax: 0.10.0
libtpu: 0.0.40
codegen_flags: <defaults>
</compile_context>

<pallas_src>
import functools

import jax
import jax.numpy as jnp
from jax.experimental import pallas as pl
from jax.experimental.pallas import tpu as pltpu

_MiB = 1024 * 1024


def _round_up(n, m):
    return ((n + m - 1) // m) * m


def _is_big_vmem_tpu():
    """True for TPU generations with 128 MiB VMEM per core (v4/v5/v6).

    Anything unknown (including v7x, 64 MiB/TC) gets the conservative sizing.
    """
    try:
        kind = jax.devices()[0].device_kind.lower()
    except Exception:
        return False
    return any(tag in kind for tag in ("v4", "v5", "v6"))


def _choose_rows_per_tile(n_rows, lane_dim, target_tile_bytes, min_grid_steps=8):
    """Sublane-aligned row tile.

    Targets ~target_tile_bytes of fp32 working set per tile, but stays small
    enough to keep >= min_grid_steps grid steps so double-buffering has work
    to overlap and both v7x TensorCores receive blocks.
    """
    if n_rows <= 8:
        return max(int(n_rows), 1)                      # full-array block (tiny inputs)
    rows_target = max(8, (target_tile_bytes // (lane_dim * 4)) // 8 * 8)
    rows_min_steps = _round_up(pl.cdiv(n_rows, min_grid_steps), 8)
    rows_all = _round_up(n_rows, 8)
    return int(max(8, min(rows_target, rows_min_steps, rows_all)))


def _norm_kernel_plain(x_ref, alpha_ref, bias_ref, o_ref, *, eps, dim):
    """LayerNorm over the last axis; block last dim == dim (full feature dim)."""
    x = x_ref[...].astype(jnp.float32)                            # (rows_t, dim)
    mean = jnp.sum(x, axis=-1, keepdims=True) * (1.0 / dim)
    xc = x - mean                                                 # two-pass moments
    var = jnp.sum(xc * xc, axis=-1, keepdims=True) * (1.0 / (dim - 1))
    inv = pl.reciprocal(jnp.sqrt(var) + eps, approx=False)
    alpha = alpha_ref[...].astype(jnp.float32)                    # (1, dim)
    bias = bias_ref[...].astype(jnp.float32)                      # (1, dim)
    o_ref[...] = ((xc * inv) * alpha + bias).astype(o_ref.dtype)


def _norm_kernel_packed(x_ref, alpha_ref, bias_ref, o_ref, *, eps, dim, k):
    """dim < 128: k = 128 // dim logical rows packed per 128-lane row.

    The HBM<->VMEM DMAs and the block store are 128-lane dense; each of the k
    contiguous lane segments is normalized independently (static unroll).
    """
    alpha = alpha_ref[...].astype(jnp.float32)                    # (1, dim)
    bias = bias_ref[...].astype(jnp.float32)                      # (1, dim)
    for s in range(k):                                            # static unroll
        lo = s * dim
        xs = x_ref[:, lo:lo + dim].astype(jnp.float32)            # (rows_t, dim)
        mean = jnp.sum(xs, axis=-1, keepdims=True) * (1.0 / dim)
        xc = xs - mean
        var = jnp.sum(xc * xc, axis=-1, keepdims=True) * (1.0 / (dim - 1))
        inv = pl.reciprocal(jnp.sqrt(var) + eps, approx=False)
        y = (xc * inv) * alpha + bias
        o_ref[:, lo:lo + dim] = y.astype(o_ref.dtype)


def norm_forward(x, alpha, bias, eps=1e-6, rows_per_tile=None):
    """x: (..., D); alpha, bias: (D,). Returns same shape/dtype as x.

    If rows_per_tile is given it should be a multiple of 8 (or >= the row count).
    """
    orig_shape = x.shape
    D = int(orig_shape[-1])
    R_total = 1
    for s in orig_shape[:-1]:
        R_total *= int(s)
    x2 = x.reshape(R_total, D)

    # Lane packing for narrow feature dims (free reshape, no copy).
    k = 1
    if 2 <= D < 128 and 128 % D == 0:
        kk = 128 // D
        if R_total >= kk and R_total % kk == 0:
            k = kk

    if k > 1:
        lane_dim = k * D
        n_rows = R_total // k
        x2 = x2.reshape(n_rows, lane_dim)
        kernel = functools.partial(_norm_kernel_packed, eps=float(eps), dim=D, k=k)
    else:
        lane_dim = D
        n_rows = R_total
        kernel = functools.partial(_norm_kernel_plain, eps=float(eps), dim=D)

    alpha2 = alpha.reshape(1, D)
    bias2 = bias.reshape(1, D)

    big_vmem = _is_big_vmem_tpu()                     # 128 MiB VMEM/core chips
    target_tile_bytes = (8 if big_vmem else 4) * _MiB  # fp32 working-set per tile

    if rows_per_tile is None:
        rows_per_tile = _choose_rows_per_tile(n_rows, lane_dim, target_tile_bytes)
    rows_per_tile = int(rows_per_tile)

    # No wrapper padding: Pallas masks the partial boundary block.
    grid = (pl.cdiv(n_rows, rows_per_tile),)

    # VMEM budget: double-buffered in + out tiles, ~3 fp32 working tiles the
    # kernel materializes (fp32 cast / xc / pre-cast y), params, +25% headroom.
    itemsize = jnp.dtype(x.dtype).itemsize
    io_tile = rows_per_tile * lane_dim * itemsize
    f32_tile = rows_per_tile * lane_dim * 4
    param_bytes = 4 * D * 4
    vmem_limit = int((4 * io_tile + 3 * f32_tile + param_bytes) * 1.25)
    vmem_limit = max(vmem_limit, 32 * _MiB)
    vmem_limit = min(vmem_limit, (96 if big_vmem else 48) * _MiB)

    out = pl.pallas_call(
        kernel,
        out_shape=jax.ShapeDtypeStruct((n_rows, lane_dim), x.dtype),
        grid_spec=pltpu.PrefetchScalarGridSpec(
            num_scalar_prefetch=0,
            grid=grid,
            in_specs=[
                pl.BlockSpec((rows_per_tile, lane_dim), lambda i: (i, 0)),
                pl.BlockSpec((1, D), lambda i: (0, 0)),
                pl.BlockSpec((1, D), lambda i: (0, 0)),
            ],
            out_specs=pl.BlockSpec((rows_per_tile, lane_dim), lambda i: (i, 0)),
        ),
        compiler_params=pltpu.CompilerParams(
            dimension_semantics=("parallel",),
            vmem_limit_bytes=vmem_limit,
        ),
    )(x2, alpha2, bias2)

    return out.reshape(orig_shape)


if __name__ == "__main__":
    key = jax.random.PRNGKey(0)
    batch, seq, dim_model = 2, 8, 32

    x = jax.random.normal(key, (batch, seq, dim_model), dtype=jnp.float32)
    # Parameter init matching nn.Parameter(torch.ones / torch.zeros).
    alpha = jnp.ones((dim_model,), dtype=jnp.float32)
    bias = jnp.zeros((dim_model,), dtype=jnp.float32)

    def ref_norm(xx):
        mean = xx.mean(axis=-1, keepdims=True)
        std = jnp.sqrt(
            jnp.sum((xx - mean) ** 2, axis=-1, keepdims=True) / (dim_model - 1))
        return alpha * (xx - mean) / (std + 1e-6) + bias

    # Packed (lane-dense) path: 16 rows, k = 4 -> (4, 128) layout.
    y = norm_forward(x, alpha, bias, eps=1e-6)
    jax.block_until_ready(y)
    assert y.shape == x.shape and y.dtype == x.dtype
    assert jnp.allclose(y, ref_norm(x), atol=1e-5, rtol=1e-5), "mismatch (packed path)"

    # 15 rows: not divisible by k -> plain path + Pallas-masked boundary block
    # (no wrapper padding / output slicing anywhere).
    x_b = jax.random.normal(jax.random.PRNGKey(1), (3, 5, dim_model), dtype=jnp.float32)
    y_b = norm_forward(x_b, alpha, bias, eps=1e-6)
    jax.block_until_ready(y_b)
    assert jnp.allclose(y_b, ref_norm(x_b), atol=1e-5, rtol=1e-5), "mismatch (plain path)"

    print("KERNEL_OK")
</pallas_src>

<mosaic_0001>
module attributes {stable_mosaic.version = 11 : i64} {
  func.func @_norm_kernel_packed(%arg0: i32, %arg1: memref<4x128xf32, #tpu.memory_space<vmem>>, %arg2: memref<1x32xf32, #tpu.memory_space<vmem>>, %arg3: memref<1x32xf32, #tpu.memory_space<vmem>>, %arg4: memref<4x128xf32, #tpu.memory_space<vmem>>) attributes {dimension_semantics = [#tpu.dimension_semantics<parallel>], iteration_bounds = array<i64: 1>, scalar_prefetch = 0 : i64, scratch_operands = 0 : i64, tpu.core_type = #tpu.core_type<tc>, window_params = [{transform_indices = @transform_0, window_bounds = array<i64: 4, 128>}, {pipeline_mode = #tpu.pipeline_mode<synchronous>, transform_indices = @transform_1, window_bounds = array<i64: 1, 32>}, {pipeline_mode = #tpu.pipeline_mode<synchronous>, transform_indices = @transform_2, window_bounds = array<i64: 1, 32>}, {transform_indices = @transform_3, window_bounds = array<i64: 4, 128>}]} {
    %c0 = arith.constant 0 : index
    %c0_0 = arith.constant 0 : index
    %0 = vector.load %arg2[%c0, %c0_0] : memref<1x32xf32, #tpu.memory_space<vmem>>, vector<1x32xf32>
    %c0_1 = arith.constant 0 : index
    %c0_2 = arith.constant 0 : index
    %1 = vector.load %arg3[%c0_1, %c0_2] : memref<1x32xf32, #tpu.memory_space<vmem>>, vector<1x32xf32>
    %c0_3 = arith.constant 0 : index
    %c0_4 = arith.constant 0 : index
    %2 = vector.load %arg1[%c0_3, %c0_4] : memref<4x128xf32, #tpu.memory_space<vmem>>, vector<4x32xf32>
    %cst = arith.constant dense<0.000000e+00> : vector<4xf32>
    %3 = vector.multi_reduction <add>, %2, %cst [1] : vector<4x32xf32> to vector<4xf32>
    %4 = vector.shape_cast %3 : vector<4xf32> to vector<4x1xf32>
    %cst_5 = arith.constant 3.125000e-02 : f32
    %5 = vector.broadcast %cst_5 : f32 to vector<4x1xf32>
    %6 = arith.mulf %4, %5 : vector<4x1xf32>
    %7 = vector.broadcast %6 : vector<4x1xf32> to vector<4x32xf32>
    %8 = arith.subf %2, %7 : vector<4x32xf32>
    %9 = arith.mulf %8, %8 : vector<4x32xf32>
    %cst_6 = arith.constant dense<0.000000e+00> : vector<4xf32>
    %10 = vector.multi_reduction <add>, %9, %cst_6 [1] : vector<4x32xf32> to vector<4xf32>
    %11 = vector.shape_cast %10 : vector<4xf32> to vector<4x1xf32>
    %cst_7 = arith.constant 0.0322580636 : f32
    %12 = vector.broadcast %cst_7 : f32 to vector<4x1xf32>
    %13 = arith.mulf %11, %12 : vector<4x1xf32>
    %14 = math.sqrt %13 : vector<4x1xf32>
    %cst_8 = arith.constant 9.99999997E-7 : f32
    %15 = vector.broadcast %cst_8 : f32 to vector<4x1xf32>
    %16 = arith.addf %14, %15 : vector<4x1xf32>
    %17 = tpu.reciprocal %16 : vector<4x1xf32> -> vector<4x1xf32>
    %18 = vector.broadcast %17 : vector<4x1xf32> to vector<4x32xf32>
    %19 = arith.mulf %8, %18 : vector<4x32xf32>
    %20 = vector.broadcast %0 : vector<1x32xf32> to vector<4x32xf32>
    %21 = arith.mulf %19, %20 : vector<4x32xf32>
    %22 = vector.broadcast %1 : vector<1x32xf32> to vector<4x32xf32>
    %23 = arith.addf %21, %22 : vector<4x32xf32>
    %c0_9 = arith.constant 0 : index
    %c0_10 = arith.constant 0 : index
    %24 = vector.load %arg4[%c0_9, %c0_10] : memref<4x128xf32, #tpu.memory_space<vmem>>, vector<4x32xf32>
    tpu.vector_store %arg4[%c0_9, %c0_10], %23 {strides = array<i32>} : memref<4x128xf32, #tpu.memory_space<vmem>>, vector<4x32xf32>,
    %c0_11 = arith.constant 0 : index
    %c32 = arith.constant 32 : index
    %25 = vector.load %arg1[%c0_11, %c32] : memref<4x128xf32, #tpu.memory_space<vmem>>, vector<4x32xf32>
    %cst_12 = arith.constant dense<0.000000e+00> : vector<4xf32>
    %26 = vector.multi_reduction <add>, %25, %cst_12 [1] : vector<4x32xf32> to vector<4xf32>
    %27 = vector.shape_cast %26 : vector<4xf32> to vector<4x1xf32>
    %cst_13 = arith.constant 3.125000e-02 : f32
    %28 = vector.broadcast %cst_13 : f32 to vector<4x1xf32>
    %29 = arith.mulf %27, %28 : vector<4x1xf32>
    %30 = vector.broadcast %29 : vector<4x1xf32> to vector<4x32xf32>
    %31 = arith.subf %25, %30 : vector<4x32xf32>
    %32 = arith.mulf %31, %31 : vector<4x32xf32>
    %cst_14 = arith.constant dense<0.000000e+00> : vector<4xf32>
    %33 = vector.multi_reduction <add>, %32, %cst_14 [1] : vector<4x32xf32> to vector<4xf32>
    %34 = vector.shape_cast %33 : vector<4xf32> to vector<4x1xf32>
    %cst_15 = arith.constant 0.0322580636 : f32
    %35 = vector.broadcast %cst_15 : f32 to vector<4x1xf32>
    %36 = arith.mulf %34, %35 : vector<4x1xf32>
    %37 = math.sqrt %36 : vector<4x1xf32>
    %cst_16 = arith.constant 9.99999997E-7 : f32
    %38 = vector.broadcast %cst_16 : f32 to vector<4x1xf32>
    %39 = arith.addf %37, %38 : vector<4x1xf32>
    %40 = tpu.reciprocal %39 : vector<4x1xf32> -> vector<4x1xf32>
    %41 = vector.broadcast %40 : vector<4x1xf32> to vector<4x32xf32>
    %42 = arith.mulf %31, %41 : vector<4x32xf32>
    %43 = vector.broadcast %0 : vector<1x32xf32> to vector<4x32xf32>
    %44 = arith.mulf %42, %43 : vector<4x32xf32>
    %45 = vector.broadcast %1 : vector<1x32xf32> to vector<4x32xf32>
    %46 = arith.addf %44, %45 : vector<4x32xf32>
    %c0_17 = arith.constant 0 : index
    %c32_18 = arith.constant 32 : index
    %47 = vector.load %arg4[%c0_17, %c32_18] : memref<4x128xf32, #tpu.memory_space<vmem>>, vector<4x32xf32>
    tpu.vector_store %arg4[%c0_17, %c32_18], %46 {strides = array<i32>} : memref<4x128xf32, #tpu.memory_space<vmem>>, vector<4x32xf32>,
    %c0_19 = arith.constant 0 : index
    %c64 = arith.constant 64 : index
    %48 = vector.load %arg1[%c0_19, %c64] : memref<4x128xf32, #tpu.memory_space<vmem>>, vector<4x32xf32>
    %cst_20 = arith.constant dense<0.000000e+00> : vector<4xf32>
    %49 = vector.multi_reduction <add>, %48, %cst_20 [1] : vector<4x32xf32> to vector<4xf32>
    %50 = vector.shape_cast %49 : vector<4xf32> to vector<4x1xf32>
    %cst_21 = arith.constant 3.125000e-02 : f32
    %51 = vector.broadcast %cst_21 : f32 to vector<4x1xf32>
    %52 = arith.mulf %50, %51 : vector<4x1xf32>
    %53 = vector.broadcast %52 : vector<4x1xf32> to vector<4x32xf32>
    %54 = arith.subf %48, %53 : vector<4x32xf32>
    %55 = arith.mulf %54, %54 : vector<4x32xf32>
    %cst_22 = arith.constant dense<0.000000e+00> : vector<4xf32>
    %56 = vector.multi_reduction <add>, %55, %cst_22 [1] : vector<4x32xf32> to vector<4xf32>
    %57 = vector.shape_cast %56 : vector<4xf32> to vector<4x1xf32>
    %cst_23 = arith.constant 0.0322580636 : f32
    %58 = vector.broadcast %cst_23 : f32 to vector<4x1xf32>
    %59 = arith.mulf %57, %58 : vector<4x1xf32>
    %60 = math.sqrt %59 : vector<4x1xf32>
    %cst_24 = arith.constant 9.99999997E-7 : f32
    %61 = vector.broadcast %cst_24 : f32 to vector<4x1xf32>
    %62 = arith.addf %60, %61 : vector<4x1xf32>
    %63 = tpu.reciprocal %62 : vector<4x1xf32> -> vector<4x1xf32>
    %64 = vector.broadcast %63 : vector<4x1xf32> to vector<4x32xf32>
    %65 = arith.mulf %54, %64 : vector<4x32xf32>
    %66 = vector.broadcast %0 : vector<1x32xf32> to vector<4x32xf32>
    %67 = arith.mulf %65, %66 : vector<4x32xf32>
    %68 = vector.broadcast %1 : vector<1x32xf32> to vector<4x32xf32>
    %69 = arith.addf %67, %68 : vector<4x32xf32>
    %c0_25 = arith.constant 0 : index
    %c64_26 = arith.constant 64 : index
    %70 = vector.load %arg4[%c0_25, %c64_26] : memref<4x128xf32, #tpu.memory_space<vmem>>, vector<4x32xf32>
    tpu.vector_store %arg4[%c0_25, %c64_26], %69 {strides = array<i32>} : memref<4x128xf32, #tpu.memory_space<vmem>>, vector<4x32xf32>,
    %c0_27 = arith.constant 0 : index
    %c96 = arith.constant 96 : index
    %71 = vector.load %arg1[%c0_27, %c96] : memref<4x128xf32, #tpu.memory_space<vmem>>, vector<4x32xf32>
    %cst_28 = arith.constant dense<0.000000e+00> : vector<4xf32>
    %72 = vector.multi_reduction <add>, %71, %cst_28 [1] : vector<4x32xf32> to vector<4xf32>
    %73 = vector.shape_cast %72 : vector<4xf32> to vector<4x1xf32>
    %cst_29 = arith.constant 3.125000e-02 : f32
    %74 = vector.broadcast %cst_29 : f32 to vector<4x1xf32>
    %75 = arith.mulf %73, %74 : vector<4x1xf32>
    %76 = vector.broadcast %75 : vector<4x1xf32> to vector<4x32xf32>
    %77 = arith.subf %71, %76 : vector<4x32xf32>
    %78 = arith.mulf %77, %77 : vector<4x32xf32>
    %cst_30 = arith.constant dense<0.000000e+00> : vector<4xf32>
    %79 = vector.multi_reduction <add>, %78, %cst_30 [1] : vector<4x32xf32> to vector<4xf32>
    %80 = vector.shape_cast %79 : vector<4xf32> to vector<4x1xf32>
    %cst_31 = arith.constant 0.0322580636 : f32
    %81 = vector.broadcast %cst_31 : f32 to vector<4x1xf32>
    %82 = arith.mulf %80, %81 : vector<4x1xf32>
    %83 = math.sqrt %82 : vector<4x1xf32>
    %cst_32 = arith.constant 9.99999997E-7 : f32
    %84 = vector.broadcast %cst_32 : f32 to vector<4x1xf32>
    %85 = arith.addf %83, %84 : vector<4x1xf32>
    %86 = tpu.reciprocal %85 : vector<4x1xf32> -> vector<4x1xf32>
    %87 = vector.broadcast %86 : vector<4x1xf32> to vector<4x32xf32>
    %88 = arith.mulf %77, %87 : vector<4x32xf32>
    %89 = vector.broadcast %0 : vector<1x32xf32> to vector<4x32xf32>
    %90 = arith.mulf %88, %89 : vector<4x32xf32>
    %91 = vector.broadcast %1 : vector<1x32xf32> to vector<4x32xf32>
    %92 = arith.addf %90, %91 : vector<4x32xf32>
    %c0_33 = arith.constant 0 : index
    %c96_34 = arith.constant 96 : index
    %93 = vector.load %arg4[%c0_33, %c96_34] : memref<4x128xf32, #tpu.memory_space<vmem>>, vector<4x32xf32>
    tpu.vector_store %arg4[%c0_33, %c96_34], %92 {strides = array<i32>} : memref<4x128xf32, #tpu.memory_space<vmem>>, vector<4x32xf32>,
    return
  }
  func.func @transform_0(%arg0: i32) -> (i32, i32) {
    %c0_i32 = arith.constant 0 : i32
    %c0_i32_0 = arith.constant 0 : i32
    return %arg0, %c0_i32 : i32, i32
  }
  func.func @transform_1(%arg0: i32) -> (i32, i32) {
    %c0_i32 = arith.constant 0 : i32
    %c0_i32_0 = arith.constant 0 : i32
    %c0_i32_1 = arith.constant 0 : i32
    return %c0_i32, %c0_i32_0 : i32, i32
  }
  func.func @transform_2(%arg0: i32) -> (i32, i32) {
    %c0_i32 = arith.constant 0 : i32
    %c0_i32_0 = arith.constant 0 : i32
    %c0_i32_1 = arith.constant 0 : i32
    return %c0_i32, %c0_i32_0 : i32, i32
  }
  func.func @transform_3(%arg0: i32) -> (i32, i32) {
    %c0_i32 = arith.constant 0 : i32
    %c0_i32_0 = arith.constant 0 : i32
    return %arg0, %c0_i32 : i32, i32
  }
}

</mosaic_0001>

<llo_original>
// kernel: tpu_custom_call.1
$region0: #{tpu_custom_call.1}
  #allocation0 [shape = 'u32[]', space=smem, size = 0x4, offset = 0x4, fixed_abs, tag = 'smem constant byte address 0x4 - core index']
  #allocation1 [shape = 'u32[144,128]{1,0:T(1,128)}', space=vmem, size = 0x12000, scoped, tag = 'internal scratch']
  %s0 = inlined_call_operand.hbm [shape: f32[4,128], index: 0, kind: input, shape index: {}]
  %s1 = inlined_call_operand.vmem [shape: f32[1,32], index: 1, kind: input, shape index: {}]
  %s2 = inlined_call_operand.vmem [shape: f32[1,32], index: 2, kind: input, shape index: {}]
  %s3 = inlined_call_operand.hbm [shape: f32[4,128], index: 3, kind: output, shape index: {}]
  %s4 = sld [smem:[#allocation0]]
  $region26: #{tpu_custom_call.1} parent=0
    _
  %s6 = ssub.s32 1, %s4
  %s7 = scalar_select 0, %s6, %s4
  $region1: #{tpu_custom_call.1} parent=0
    #allocation2 [shape = 'u8[2048]{0}', space=vmem, size = 0x800, scoped, tag = 'input window, operand 0, single buffered']
    #allocation3 [shape = 's32[1]{0}', space=sflag, size = 0x4, scoped, tag = 'scoped memory for tpu_custom_call.1']
    #allocation4 [shape = 's32[1]{0}', space=sflag, size = 0x4, scoped, tag = 'scoped memory for tpu_custom_call.1']
    #allocation5 [shape = 'u8[2048]{0}', space=vmem, size = 0x800, scoped, tag = 'output window, operand 0, single buffered']
    %8 = vsyncpa [#allocation3], 0
    %9 = vsyncpa [#allocation4], 0
    // Predicated region
    $region2: #{tpu_custom_call.1} parent=1 // pred_check
      _
    $region3: #{tpu_custom_call.1} parent=1 // pred_check_branch
      %11 = sbr.rel (0) target = $region5
    $region4: #{tpu_custom_call.1} parent=1 // pred_region
      %s13 = ssub.s32 64, 64
      %14 = vsyncadd [#allocation3], %s13
      %s16 = sshll.u32 [#allocation2], 4
      %s17 = int_to_ptr.vmem [resolvable:$true] %s16
      %19 = dma.hbm_to_vmem [thread:$0]  %s0, 64, %s17, [#allocation3]
    $region5: #{tpu_custom_call.1} parent=1 // pred_fallthru
      _
    // Predicated region
    $region6: #{tpu_custom_call.1} parent=1 // pred_check
      _
    $region7: #{tpu_custom_call.1} parent=1 // pred_check_branch
      %21 = sbr.rel (0) target = $region9
    $region8: #{tpu_custom_call.1} parent=1 // pred_region
      _
    $region9: #{tpu_custom_call.1} parent=1 // pred_fallthru
      _
    // Predicated region
    $region10: #{tpu_custom_call.1} parent=1 // pred_check
      _
    $region11: #{tpu_custom_call.1} parent=1 // pred_check_branch
      %23 = sbr.rel (0) target = $region13
    $region12: #{tpu_custom_call.1} parent=1 // pred_region
      _
    $region13: #{tpu_custom_call.1} parent=1 // pred_fallthru
      _
    // Predicated region
    $region14: #{tpu_custom_call.1} parent=1 // pred_check
      _
    $region15: #{tpu_custom_call.1} parent=1 // pred_check_branch
      %25 = sbr.rel (0) target = $region17
    $region16: #{tpu_custom_call.1} parent=1 // pred_region
      %26 = dma.done [#allocation3], 64
    $region17: #{tpu_custom_call.1} parent=1 // pred_fallthru
      _
    %v27 = vld [vmem:[%s1] sm:$0x1]
    %v28 = vld [vmem:[%s2] sm:$0x1]
    %v29 = vld [vmem:[#allocation2] sm:$0xf]
    %vm30 = vcmask 257024
    %v31 = vsel %vm30, %v29, 0.0
    %32 = vadd.xlane.f32.xlu0 %v31
    %v33 = vpop.xlane.xlu0 %32
    %v34 = vmul.f32 %v33, 0.03125
    %v35 = vsub.f32 %v29, %v34
    %v36 = vmul.f32 %v35, %v35
    %v37 = vsel %vm30, %v36, 0.0
    %38 = vadd.xlane.f32.xlu0 %v37
    %v39 = vpop.xlane.xlu0 %38
    %v40 = vmul.f32 %v39, 0.032258064
    %v41 = vrsqrt.pop %v40
    %v42 = vmul.f32 %v40, %v41
    %vm43 = vcmp.eq.f32.partialorder %v40, inf
    %v44 = vsel %vm43, %v40, %v42
    %vm45 = vcmp.eq.f32.partialorder %v40, 0.0
    %v46 = vand.u32 %v40, 2147483648
    %v47 = vsel %vm45, %v46, %v44
    %v48 = vadd.f32 %v47, 1e-06
    %v49 = vrcp.pop %v48
    %v50 = vmul.f32 %v35, %v49
    %v52 = vlaneseq
    %v53 = vshrl.u32 %v52, 7
    %v54 = vsub.s32 0, %v53
    %v55 = vrot.slane %v27, %v54
    %v57 = vmul.f32 %v50, %v55
    %v59 = vlaneseq
    %v60 = vshrl.u32 %v59, 7
    %v61 = vsub.s32 0, %v60
    %v62 = vrot.slane %v28, %v61
    %v64 = vadd.f32 %v57, %v62
    %65 = vst.msk [vmem:[#allocation5] sm:$0xf] %vm30, %v64
    %v66 = vld [vmem:[#allocation2] sm:$0xf]
    %68 = vrot.lane.b32.xlu0 %v66, 96
    %v69 = vpop.permute.xlu0 %68
    %v71 = vsel %vm30, %v69, 0.0
    %72 = vadd.xlane.f32.xlu0 %v71
    %v73 = vpop.xlane.xlu0 %72
    %v74 = vmul.f32 %v73, 0.03125
    %v75 = vsub.f32 %v66, %v74
    %v76 = vmul.f32 %v75, %v75
    %78 = vrot.lane.b32.xlu0 %v76, 96
    %v79 = vpop.permute.xlu0 %78
    %v81 = vsel %vm30, %v79, 0.0
    %82 = vadd.xlane.f32.xlu0 %v81
    %v83 = vpop.xlane.xlu0 %82
    %v84 = vmul.f32 %v83, 0.032258064
    %v85 = vrsqrt.pop %v84
    %v86 = vmul.f32 %v84, %v85
    %vm87 = vcmp.eq.f32.partialorder %v84, inf
    %v88 = vsel %vm87, %v84, %v86
    %vm89 = vcmp.eq.f32.partialorder %v84, 0.0
    %v90 = vand.u32 %v84, 2147483648
    %v91 = vsel %vm89, %v90, %v88
    %v92 = vadd.f32 %v91, 1e-06
    %v93 = vrcp.pop %v92
    %v94 = vmul.f32 %v75, %v93
    %95 = vrot.lane.b32.xlu0 %v55, 32
    %v96 = vpop.permute.xlu0 %95
    %v98 = vmul.f32 %v94, %v96
    %99 = vrot.lane.b32.xlu0 %v62, 32
    %v100 = vpop.permute.xlu0 %99
    %v102 = vadd.f32 %v98, %v100
    %vm103 = vcmask 519424
    %104 = vst.msk [vmem:[#allocation5] sm:$0xf] %vm103, %v102
    %v105 = vld [vmem:[#allocation2] sm:$0xf]
    %107 = vrot.lane.b32.xlu0 %v105, 64
    %v108 = vpop.permute.xlu0 %107
    %v110 = vsel %vm30, %v108, 0.0
    %111 = vadd.xlane.f32.xlu0 %v110
    %v112 = vpop.xlane.xlu0 %111
    %v113 = vmul.f32 %v112, 0.03125
    %v114 = vsub.f32 %v105, %v113
    %v115 = vmul.f32 %v114, %v114
    %117 = vrot.lane.b32.xlu0 %v115, 64
    %v118 = vpop.permute.xlu0 %117
    %v120 = vsel %vm30, %v118, 0.0
    %121 = vadd.xlane.f32.xlu0 %v120
    %v122 = vpop.xlane.xlu0 %121
    %v123 = vmul.f32 %v122, 0.032258064
    %v124 = vrsqrt.pop %v123
    %v125 = vmul.f32 %v123, %v124
    %vm126 = vcmp.eq.f32.partialorder %v123, inf
    %v127 = vsel %vm126, %v123, %v125
    %vm128 = vcmp.eq.f32.partialorder %v123, 0.0
    %v129 = vand.u32 %v123, 2147483648
    %v130 = vsel %vm128, %v129, %v127
    %v131 = vadd.f32 %v130, 1e-06
    %v132 = vrcp.pop %v131
    %v133 = vmul.f32 %v114, %v132
    %134 = vrot.lane.b32.xlu0 %v55, 64
    %v135 = vpop.permute.xlu0 %134
    %v137 = vmul.f32 %v133, %v135
    %138 = vrot.lane.b32.xlu0 %v62, 64
    %v139 = vpop.permute.xlu0 %138
    %v141 = vadd.f32 %v137, %v139
    %vm142 = vcmask 781824
    %143 = vst.msk [vmem:[#allocation5] sm:$0xf] %vm142, %v141
    %v144 = vld [vmem:[#allocation2] sm:$0xf]
    %146 = vrot.lane.b32.xlu0 %v144, 32
    %v147 = vpop.permute.xlu0 %146
    %v149 = vsel %vm30, %v147, 0.0
    %150 = vadd.xlane.f32.xlu0 %v149
    %v151 = vpop.xlane.xlu0 %150
    %v152 = vmul.f32 %v151, 0.03125
    %v153 = vsub.f32 %v144, %v152
    %v154 = vmul.f32 %v153, %v153
    %156 = vrot.lane.b32.xlu0 %v154, 32
    %v157 = vpop.permute.xlu0 %156
    %v159 = vsel %vm30, %v157, 0.0
    %160 = vadd.xlane.f32.xlu0 %v159
    %v161 = vpop.xlane.xlu0 %160
    %v162 = vmul.f32 %v161, 0.032258064
    %v163 = vrsqrt.pop %v162
    %v164 = vmul.f32 %v162, %v163
    %vm165 = vcmp.eq.f32.partialorder %v162, inf
    %v166 = vsel %vm165, %v162, %v164
    %vm167 = vcmp.eq.f32.partialorder %v162, 0.0
    %v168 = vand.u32 %v162, 2147483648
    %v169 = vsel %vm167, %v168, %v166
    %v170 = vadd.f32 %v169, 1e-06
    %v171 = vrcp.pop %v170
    %v172 = vmul.f32 %v153, %v171
    %173 = vrot.lane.b32.xlu0 %v55, 96
    %v174 = vpop.permute.xlu0 %173
    %v176 = vmul.f32 %v172, %v174
    %177 = vrot.lane.b32.xlu0 %v62, 96
    %v178 = vpop.permute.xlu0 %177
    %v180 = vadd.f32 %v176, %v178
    %vm181 = vcmask 1044224
    %182 = vst.msk [vmem:[#allocation5] sm:$0xf] %vm181, %v180
    // Predicated region
    $region18: #{tpu_custom_call.1} parent=1 // pred_check
      _
    $region19: #{tpu_custom_call.1} parent=1 // pred_check_branch
      %184 = sbr.rel (0) target = $region21
    $region20: #{tpu_custom_call.1} parent=1 // pred_region
      %s186 = ssub.s32 64, 64
      %187 = vsyncadd [#allocation4], %s186
      %s189 = sshll.u32 [#allocation5], 4
      %s190 = int_to_ptr.vmem [resolvable:$true] %s189
      %192 = dma.vmem_to_hbm [thread:$0]  %s190, 64, %s3, [#allocation4]
    $region21: #{tpu_custom_call.1} parent=1 // pred_fallthru
      _
    // Predicated region
    $region22: #{tpu_custom_call.1} parent=1 // pred_check
      _
    $region23: #{tpu_custom_call.1} parent=1 // pred_check_branch
      %194 = sbr.rel (0) target = $region25
    $region24: #{tpu_custom_call.1} parent=1 // pred_region
      %195 = dma.done [#allocation4], 64
    $region25: #{tpu_custom_call.1} parent=1 // pred_fallthru
      _
    %196 = vsyncpa [#allocation3], 1
    %197 = vsyncpa [#allocation4], 1

</llo_original>
